<compile_context>
chip_gen: v7x
topology: tpu7x:2x2x1
jax: 0.10.0
libtpu: 0.0.40
codegen_flags: <defaults>
</compile_context>

<pallas_src>
import jax
import jax.numpy as jnp
from jax import lax
from jax.experimental import pallas as pl
from jax.experimental.pallas import tpu as pltpu

EPS = 1e-5


# --------------------------------------------------------------------------- #
# Small static helpers (trace-time only)
# --------------------------------------------------------------------------- #
def _round_up(a, b):
    return (a + b - 1) // b * b


def _sublane_step(itemsize):
    # f32 -> 8, bf16/f16 -> 16, int8/fp8 -> 32  (packed sublane tiling)
    return max(8, 32 // int(itemsize))


def _c_tile_candidates(c, step):
    cands = [d for d in range(step, c + 1, step) if c % d == 0]
    if c not in cands:
        cands.append(c)          # full extent is always layout-legal
    return sorted(cands)


def _choose_hw_tile(hwp, c_tile, itemsize, target_slab):
    """Largest multiple-of-128 divisor of hwp whose (c_tile, hw_tile) block fits."""
    best = 128
    for d in range(128, hwp + 1, 128):
        if hwp % d == 0 and c_tile * d * itemsize <= target_slab:
            best = d
    return best


def _vmem_capacity_bytes():
    """Physical VMEM per TensorCore; conservative 64 MiB (v7x-class) if unknown."""
    try:
        cap = int(pltpu.get_tpu_info().vmem_capacity_bytes)
        if cap > 0:
            return cap
    except Exception:
        pass
    return 64 << 20


# --------------------------------------------------------------------------- #
# Fused single-pass kernel (stats + normalize on one resident channel slab)
# --------------------------------------------------------------------------- #
def _make_fused_kernel(n, hw_valid, hw_padded, x_dtype):
    pad = hw_padded - hw_valid
    inv_count = 1.0 / float(n * hw_valid)
    sweep_f32 = jnp.dtype(x_dtype) == jnp.dtype(jnp.float32)

    def kernel(x_ref, gb_ref, o_ref):
        # x_ref : (N, c_tile, HWp)   input slab
        # gb_ref: (N, c_tile, 2)     f32 [gamma | beta] per (sample, channel)
        # o_ref : (N, c_tile, HWp)
        c_t = x_ref.shape[1]
        zero = jnp.zeros((c_t, 1), jnp.float32)

        # ---- sweep 1 (in VMEM): per-channel sum over (N, HW) ----
        # Per-sample planes keep the largest live f32 temp at (c_tile, HWp).
        def sum_body(i, acc):
            xi = x_ref[i].astype(jnp.float32)                    # (c_t, HWp)
            return acc + jnp.sum(xi, axis=-1, keepdims=True)

        s1 = lax.fori_loop(0, n, sum_body, zero)
        mean = s1 * inv_count                                    # pad zeros add 0

        # ---- sweep 2 (in VMEM): centered sum of squares (no cancellation) ----
        def var_body(i, acc):
            d = x_ref[i].astype(jnp.float32) - mean
            return acc + jnp.sum(d * d, axis=-1, keepdims=True)

        ssq = lax.fori_loop(0, n, var_body, zero)
        if pad:
            # each zero-padded element contributed (0 - mean)^2 = mean^2; remove it
            ssq = ssq - float(n * pad) * (mean * mean)
        var = jnp.maximum(ssq * inv_count, 0.0)                  # biased variance
        inv_std = lax.rsqrt(var + EPS)                           # (c_t, 1)

        # ---- sweep 3: fused normalize + conditional affine, per sample ----
        def norm_body(i, carry):
            gi = gb_ref[i]                                       # (c_t, 2) f32
            scale = gi[:, 0:1] * inv_std                         # gamma / sqrt(var+eps)
            shift = gi[:, 1:2] - scale * mean                    # beta - scale*mean
            if sweep_f32:
                xi = x_ref[i].astype(jnp.float32)
                o_ref[i] = (xi * scale + shift).astype(o_ref.dtype)
            else:
                # sub-f32 I/O: do the sweep in the native dtype (v7x VALU trim)
                xi = x_ref[i]
                o_ref[i] = (xi * scale.astype(xi.dtype)
                            + shift.astype(xi.dtype)).astype(o_ref.dtype)
            return carry

        lax.fori_loop(0, n, norm_body, 0)

    return kernel


# --------------------------------------------------------------------------- #
# Two-pass fallback kernels (stats over HBM, then normalize)
# --------------------------------------------------------------------------- #
def _stats_kernel(x_ref, s_ref):
    # x_ref: (1, c_tile, hw_tile);  s_ref: (c_tile, 2) f32 accumulator (resident
    # across the two reduction grid axes). Uses s1/s2 to keep HBM traffic at one
    # read of x for the whole stats pass.
    @pl.when(jnp.logical_and(pl.program_id(1) == 0, pl.program_id(2) == 0))
    def _():
        s_ref[...] = jnp.zeros_like(s_ref)

    x = x_ref[0].astype(jnp.float32)                             # (c_t, hw_t)
    s_ref[:, 0:1] += jnp.sum(x, axis=-1, keepdims=True)
    s_ref[:, 1:2] += jnp.sum(x * x, axis=-1, keepdims=True)


def _make_apply_kernel(x_dtype):
    sweep_f32 = jnp.dtype(x_dtype) == jnp.dtype(jnp.float32)

    def kernel(x_ref, ss_ref, o_ref):
        # x_ref: (1, c_tile, hw_tile); ss_ref: (1, c_tile, 2) f32 [scale | shift]
        scale = ss_ref[:, :, 0:1]
        shift = ss_ref[:, :, 1:2]
        if sweep_f32:
            o_ref[...] = (x_ref[...].astype(jnp.float32) * scale
                          + shift).astype(o_ref.dtype)
        else:
            x = x_ref[...]
            o_ref[...] = (x * scale.astype(x.dtype)
                          + shift.astype(x.dtype)).astype(o_ref.dtype)

    return kernel


# --------------------------------------------------------------------------- #
# Wrapper
# --------------------------------------------------------------------------- #
def conditional_norm(x, class_id, embed_w, embed_b, *, force_two_pass=False):
    """x: (N, C, H, W); class_id: (N, n_cond);
    embed_w: (2C, n_cond) (PyTorch Linear weight layout); embed_b: (2C,)."""
    n, c, h, w = x.shape
    hw = h * w
    x_dtype = x.dtype
    itemsize = jnp.dtype(x_dtype).itemsize

    # Conditional affine params: tiny matmul, done in XLA (not worth the MXU
    # inside a bandwidth-bound kernel; avoids re-loading W every grid step).
    emb = (class_id.astype(jnp.float32) @ embed_w.T.astype(jnp.float32)
           + embed_b.astype(jnp.float32))                        # (N, 2C)
    gamma = emb[:, :c]                                           # (N, C)
    beta = emb[:, c:]                                            # (N, C)

    # Lane-dense HW: pad the flattened spatial axis to a multiple of 128 so loads
    # and the store sweep use unmasked full vregs.  NOTE: the pad/slice costs one
    # extra HBM pass on misaligned shapes; aligned shapes (HW % 128 == 0) pay zero.
    hwp = _round_up(hw, 128)
    x3 = x.reshape(n, c, hw)
    if hwp != hw:
        x3 = jnp.pad(x3, ((0, 0), (0, 0), (0, hwp - hw)))

    # Per-generation VMEM budget (v7x-class: 64 MiB/TC; v5e/v6e: 128 MiB).
    cap = _vmem_capacity_bytes()
    if cap <= (64 << 20):
        total_budget, target_slab, multi_tc = 48 << 20, 5 << 20, True
    else:
        total_budget, target_slab, multi_tc = 96 << 20, 10 << 20, False

    step = _sublane_step(itemsize)                               # dtype-aware sublane
    cands = _c_tile_candidates(c, step)

    def slab_bytes(ct):
        return n * ct * hwp * itemsize

    def total_bytes(ct):
        # 2x input + 2x output pipeline buffers, 2x lane-padded gamma/beta buffers,
        # ~2 per-sample f32 temp planes, ~2 MiB headroom.
        gb_buf = n * _round_up(ct, 8) * 128 * 4
        f32_plane = ct * hwp * 4
        return 4 * slab_bytes(ct) + 2 * gb_buf + 2 * f32_plane + (2 << 20)

    within_budget = [d for d in cands if total_bytes(d) <= total_budget]
    preferred = [d for d in within_budget if slab_bytes(d) <= target_slab]

    use_fused = bool(within_budget) and not force_two_pass

    if use_fused:
        c_tile = preferred[-1] if preferred else within_budget[0]
        # v7x-class: keep the channel grid >= 2 so both TensorCores get work.
        if multi_tc and (c // c_tile) < 2:
            halves = [d for d in within_budget if d <= c // 2]
            if halves:
                c_tile = halves[-1]
        grid = (c // c_tile,)
        gb = jnp.stack([gamma, beta], axis=-1)                   # (N, C, 2) f32
        vmem_limit = int(min(max(total_bytes(c_tile), 32 << 20), cap))

        out3 = pl.pallas_call(
            _make_fused_kernel(n, hw, hwp, x_dtype),
            out_shape=jax.ShapeDtypeStruct((n, c, hwp), x_dtype),
            grid=grid,
            in_specs=[
                pl.BlockSpec((n, c_tile, hwp), lambda i: (0, i, 0)),
                pl.BlockSpec((n, c_tile, 2), lambda i: (0, i, 0)),
            ],
            out_specs=pl.BlockSpec((n, c_tile, hwp), lambda i: (0, i, 0)),
            compiler_params=pltpu.CompilerParams(
                dimension_semantics=("parallel",),
                vmem_limit_bytes=vmem_limit),
        )(x3, gb)
    else:
        # ---- Two-pass fallback: stats kernel, then normalize kernel (~3x HBM) ----
        # TODO(synk): pathological channel counts (huge C with no sublane-step
        # divisor) could still exceed the budget here; not handled.
        c_tile = cands[0]
        hw_tile = _choose_hw_tile(hwp, c_tile, itemsize, target_slab)
        count = float(n * hw)
        blk = c_tile * hw_tile * itemsize
        f32_blk = c_tile * hw_tile * 4

        vmem1 = int(min(max(2 * blk + f32_blk + (4 << 20), 32 << 20), cap))
        stats = pl.pallas_call(
            _stats_kernel,
            out_shape=jax.ShapeDtypeStruct((c, 2), jnp.float32),
            grid=(c // c_tile, n, hwp // hw_tile),
            in_specs=[pl.BlockSpec((1, c_tile, hw_tile),
                                   lambda ci, ni, hi: (ni, ci, hi))],
            out_specs=pl.BlockSpec((c_tile, 2), lambda ci, ni, hi: (ci, 0)),
            compiler_params=pltpu.CompilerParams(
                dimension_semantics=("parallel", "arbitrary", "arbitrary"),
                vmem_limit_bytes=vmem1),
        )(x3)

        mean = stats[:, 0] / count                               # (C,)
        var = jnp.maximum(stats[:, 1] / count - mean * mean, 0.0)
        inv_std = lax.rsqrt(var + EPS)
        scale = gamma * inv_std[None, :]                         # (N, C)
        shift = beta - scale * mean[None, :]
        ss = jnp.stack([scale, shift], axis=-1)                  # (N, C, 2) f32

        vmem2 = int(min(max(4 * blk + 2 * f32_blk + (4 << 20), 32 << 20), cap))
        out3 = pl.pallas_call(
            _make_apply_kernel(x_dtype),
            out_shape=jax.ShapeDtypeStruct((n, c, hwp), x_dtype),
            grid=(c // c_tile, n, hwp // hw_tile),
            in_specs=[
                pl.BlockSpec((1, c_tile, hw_tile),
                             lambda ci, ni, hi: (ni, ci, hi)),
                pl.BlockSpec((1, c_tile, 2),
                             lambda ci, ni, hi: (ni, ci, 0)),
            ],
            out_specs=pl.BlockSpec((1, c_tile, hw_tile),
                                   lambda ci, ni, hi: (ni, ci, hi)),
            compiler_params=pltpu.CompilerParams(
                dimension_semantics=("parallel", "parallel", "parallel"),
                vmem_limit_bytes=vmem2),
        )(x3, ss)

    if hwp != hw:
        out3 = out3[:, :, :hw]
    return out3.reshape(n, c, h, w)


# --------------------------------------------------------------------------- #
# Pure-JAX reference mirroring the PyTorch forward (training-mode BN)
# --------------------------------------------------------------------------- #
def _reference(x, class_id, embed_w, embed_b):
    mean = jnp.mean(x, axis=(0, 2, 3), keepdims=True)
    var = jnp.mean((x - mean) ** 2, axis=(0, 2, 3), keepdims=True)
    x_hat = (x - mean) / jnp.sqrt(var + EPS)
    emb = class_id @ embed_w.T + embed_b
    c = x.shape[1]
    gamma = emb[:, :c].reshape(-1, c, 1, 1)
    beta = emb[:, c:].reshape(-1, c, 1, 1)
    return gamma * x_hat + beta


if __name__ == "__main__":
    key = jax.random.PRNGKey(0)
    k_x, k_cid, k_g, k_b = jax.random.split(key, 4)

    N, C, H, W = 2, 4, 16, 16
    N_COND = 32

    x = jax.random.normal(k_x, (N, C, H, W), dtype=jnp.float32)
    class_id = jax.random.normal(k_cid, (N, N_COND), dtype=jnp.float32)

    # Deterministic parameter init mirroring the module __init__:
    #   embed.weight[:, :C] ~ N(1, 0.02); embed.weight[:, C:] = 0
    #   embed.bias: PyTorch Linear default uniform(-1/sqrt(fan_in), 1/sqrt(fan_in))
    embed_w = jnp.zeros((2 * C, N_COND), dtype=jnp.float32)
    embed_w = embed_w.at[:, :C].set(
        1.0 + 0.02 * jax.random.normal(k_g, (2 * C, C), dtype=jnp.float32))
    bound = 1.0 / jnp.sqrt(float(N_COND))
    embed_b = jax.random.uniform(k_b, (2 * C,), dtype=jnp.float32,
                                 minval=-bound, maxval=bound)

    # Fused single-pass path (lane-aligned HW = 256).
    out = jax.block_until_ready(conditional_norm(x, class_id, embed_w, embed_b))
    ref = _reference(x, class_id, embed_w, embed_b)
    assert out.shape == (N, C, H, W)
    assert jnp.allclose(out, ref, atol=1e-4, rtol=1e-4), "fused path mismatch"

    # Two-pass fallback path (used for shapes whose channel slab exceeds VMEM).
    out_tp = jax.block_until_ready(
        conditional_norm(x, class_id, embed_w, embed_b, force_two_pass=True))
    assert jnp.allclose(out_tp, ref, atol=1e-4, rtol=1e-4), "two-pass mismatch"

    # Misaligned-HW path (14x14 -> padded to 256 lanes, mean/var pad-corrected).
    x_odd = jax.random.normal(k_x, (N, C, 14, 14), dtype=jnp.float32)
    out_odd = jax.block_until_ready(
        conditional_norm(x_odd, class_id, embed_w, embed_b))
    ref_odd = _reference(x_odd, class_id, embed_w, embed_b)
    assert jnp.allclose(out_odd, ref_odd, atol=1e-4, rtol=1e-4), "padded-HW mismatch"

    # bf16 I/O path (stats in f32, normalize sweep in bf16).
    xb = x.astype(jnp.bfloat16)
    out_b = jax.block_until_ready(conditional_norm(xb, class_id, embed_w, embed_b))
    ref_b = _reference(xb.astype(jnp.float32), class_id, embed_w, embed_b)
    assert jnp.allclose(out_b.astype(jnp.float32), ref_b, atol=0.1, rtol=0.1), \
        "bf16 path mismatch"

    print("KERNEL_OK")
</pallas_src>

<mosaic_0001>
module attributes {stable_mosaic.version = 11 : i64} {
  func.func @kernel(%arg0: i32, %arg1: memref<2x4x256xf32, #tpu.memory_space<vmem>>, %arg2: memref<2x4x2xf32, #tpu.memory_space<vmem>>, %arg3: memref<2x4x256xf32, #tpu.memory_space<vmem>>) attributes {dimension_semantics = [#tpu.dimension_semantics<parallel>], iteration_bounds = array<i64: 1>, scalar_prefetch = 0 : i64, scratch_operands = 0 : i64, tpu.core_type = #tpu.core_type<tc>, window_params = [{transform_indices = @transform_0, window_bounds = array<i64: 2, 4, 256>}, {transform_indices = @transform_1, window_bounds = array<i64: 2, 4, 2>}, {transform_indices = @transform_2, window_bounds = array<i64: 2, 4, 256>}]} {
    %cst = arith.constant 0.000000e+00 : f32
    %0 = vector.broadcast %cst : f32 to vector<4x1xf32>
    %c0_i32 = arith.constant 0 : i32
    %c2_i32 = arith.constant 2 : i32
    %1 = arith.addi %c0_i32, %c2_i32 : i32
    %c1_i32 = arith.constant 1 : i32
    %2 = scf.for %arg4 = %c0_i32 to %1 step %c1_i32 iter_args(%arg5 = %0) -> (vector<4x1xf32>)  : i32 {
      %15 = arith.index_cast %arg4 : i32 to index
      %c0 = arith.constant 0 : index
      %c0_13 = arith.constant 0 : index
      %16 = vector.load %arg1[%15, %c0, %c0_13] : memref<2x4x256xf32, #tpu.memory_space<vmem>>, vector<1x4x256xf32>
      %17 = vector.shape_cast %16 : vector<1x4x256xf32> to vector<4x256xf32>
      %cst_14 = arith.constant dense<0.000000e+00> : vector<4xf32>
      %18 = vector.multi_reduction <add>, %17, %cst_14 [1] : vector<4x256xf32> to vector<4xf32>
      %19 = vector.shape_cast %18 : vector<4xf32> to vector<4x1xf32>
      %20 = arith.addf %arg5, %19 : vector<4x1xf32>
      scf.yield %20 : vector<4x1xf32>
    }
    %c2_i32_0 = arith.constant 2 : i32
    %cst_1 = arith.constant 0.001953125 : f32
    %3 = vector.broadcast %cst_1 : f32 to vector<4x1xf32>
    %4 = arith.mulf %2, %3 : vector<4x1xf32>
    %c0_i32_2 = arith.constant 0 : i32
    %c2_i32_3 = arith.constant 2 : i32
    %5 = arith.addi %c0_i32_2, %c2_i32_3 : i32
    %c1_i32_4 = arith.constant 1 : i32
    %6 = scf.for %arg4 = %c0_i32_2 to %5 step %c1_i32_4 iter_args(%arg5 = %0) -> (vector<4x1xf32>)  : i32 {
      %15 = arith.index_cast %arg4 : i32 to index
      %c0 = arith.constant 0 : index
      %c0_13 = arith.constant 0 : index
      %16 = vector.load %arg1[%15, %c0, %c0_13] : memref<2x4x256xf32, #tpu.memory_space<vmem>>, vector<1x4x256xf32>
      %17 = vector.shape_cast %16 : vector<1x4x256xf32> to vector<4x256xf32>
      %18 = vector.broadcast %4 : vector<4x1xf32> to vector<4x256xf32>
      %19 = arith.subf %17, %18 : vector<4x256xf32>
      %20 = arith.mulf %19, %19 : vector<4x256xf32>
      %cst_14 = arith.constant dense<0.000000e+00> : vector<4xf32>
      %21 = vector.multi_reduction <add>, %20, %cst_14 [1] : vector<4x256xf32> to vector<4xf32>
      %22 = vector.shape_cast %21 : vector<4xf32> to vector<4x1xf32>
      %23 = arith.addf %arg5, %22 : vector<4x1xf32>
      scf.yield %23 : vector<4x1xf32>
    }
    %c2_i32_5 = arith.constant 2 : i32
    %cst_6 = arith.constant 0.001953125 : f32
    %7 = vector.broadcast %cst_6 : f32 to vector<4x1xf32>
    %8 = arith.mulf %6, %7 : vector<4x1xf32>
    %cst_7 = arith.constant 0.000000e+00 : f32
    %9 = vector.broadcast %cst_7 : f32 to vector<4x1xf32>
    %10 = arith.maximumf %8, %9 : vector<4x1xf32>
    %cst_8 = arith.constant 9.99999974E-6 : f32
    %11 = vector.broadcast %cst_8 : f32 to vector<4x1xf32>
    %12 = arith.addf %10, %11 : vector<4x1xf32>
    %13 = math.rsqrt %12 : vector<4x1xf32>
    %c0_i32_9 = arith.constant 0 : i32
    %c2_i32_10 = arith.constant 2 : i32
    %14 = arith.addi %c0_i32_9, %c2_i32_10 : i32
    %c1_i32_11 = arith.constant 1 : i32
    scf.for %arg4 = %c0_i32_9 to %14 step %c1_i32_11  : i32 {
      %15 = arith.index_cast %arg4 : i32 to index
      %c0 = arith.constant 0 : index
      %c0_13 = arith.constant 0 : index
      %16 = vector.load %arg2[%15, %c0, %c0_13] : memref<2x4x2xf32, #tpu.memory_space<vmem>>, vector<1x4x2xf32>
      %17 = vector.shape_cast %16 : vector<1x4x2xf32> to vector<4x2xf32>
      %18 = vector.extract_strided_slice %17 {offsets = [0, 0], sizes = [4, 1], strides = [1, 1]} : vector<4x2xf32> to vector<4x1xf32>
      %19 = arith.mulf %18, %13 : vector<4x1xf32>
      %20 = vector.extract_strided_slice %17 {offsets = [0, 1], sizes = [4, 1], strides = [1, 1]} : vector<4x2xf32> to vector<4x1xf32>
      %21 = arith.mulf %19, %4 : vector<4x1xf32>
      %22 = arith.subf %20, %21 : vector<4x1xf32>
      %23 = arith.index_cast %arg4 : i32 to index
      %c0_14 = arith.constant 0 : index
      %c0_15 = arith.constant 0 : index
      %24 = vector.load %arg1[%23, %c0_14, %c0_15] : memref<2x4x256xf32, #tpu.memory_space<vmem>>, vector<1x4x256xf32>
      %25 = vector.shape_cast %24 : vector<1x4x256xf32> to vector<4x256xf32>
      %26 = vector.broadcast %19 : vector<4x1xf32> to vector<4x256xf32>
      %27 = arith.mulf %25, %26 : vector<4x256xf32>
      %28 = vector.broadcast %22 : vector<4x1xf32> to vector<4x256xf32>
      %29 = arith.addf %27, %28 : vector<4x256xf32>
      %30 = arith.index_cast %arg4 : i32 to index
      %c0_16 = arith.constant 0 : index
      %c0_17 = arith.constant 0 : index
      %31 = vector.load %arg3[%30, %c0_16, %c0_17] : memref<2x4x256xf32, #tpu.memory_space<vmem>>, vector<1x4x256xf32>
      %32 = vector.shape_cast %31 : vector<1x4x256xf32> to vector<4x256xf32>
      %33 = vector.shape_cast %29 : vector<4x256xf32> to vector<1x4x256xf32>
      tpu.vector_store %arg3[%30, %c0_16, %c0_17], %33 {strides = array<i32>} : memref<2x4x256xf32, #tpu.memory_space<vmem>>, vector<1x4x256xf32>,
    }
    %c2_i32_12 = arith.constant 2 : i32
    return
  }
  func.func @transform_0(%arg0: i32) -> (i32, i32, i32) {
    %c0_i32 = arith.constant 0 : i32
    %c0_i32_0 = arith.constant 0 : i32
    %c0_i32_1 = arith.constant 0 : i32
    return %c0_i32, %arg0, %c0_i32_0 : i32, i32, i32
  }
  func.func @transform_1(%arg0: i32) -> (i32, i32, i32) {
    %c0_i32 = arith.constant 0 : i32
    %c0_i32_0 = arith.constant 0 : i32
    %c0_i32_1 = arith.constant 0 : i32
    return %c0_i32, %arg0, %c0_i32_0 : i32, i32, i32
  }
  func.func @transform_2(%arg0: i32) -> (i32, i32, i32) {
    %c0_i32 = arith.constant 0 : i32
    %c0_i32_0 = arith.constant 0 : i32
    %c0_i32_1 = arith.constant 0 : i32
    return %c0_i32, %arg0, %c0_i32_0 : i32, i32, i32
  }
}

</mosaic_0001>

<llo_original>
// kernel: tpu_custom_call.1
$region0: #{tpu_custom_call.1}
  #allocation0 [shape = 'u32[]', space=smem, size = 0x4, offset = 0x4, fixed_abs, tag = 'smem constant byte address 0x4 - core index']
  #allocation1 [shape = 'u32[144,128]{1,0:T(1,128)}', space=vmem, size = 0x12000, scoped, tag = 'internal scratch']
  %s0 = inlined_call_operand.hbm [shape: f32[2,4,256], index: 0, kind: input, shape index: {}]
  %s1 = inlined_call_operand.vmem [shape: f32[2,4,2], index: 1, kind: input, shape index: {}]
  %s2 = inlined_call_operand.hbm [shape: f32[2,4,256], index: 2, kind: output, shape index: {}]
  %s3 = sld [smem:[#allocation0]]
  $region43: #{tpu_custom_call.1} parent=0
    _
  %s5 = ssub.s32 1, %s3
  %s6 = scalar_select 0, %s5, %s3
  $region1: #{tpu_custom_call.1} parent=0
    #allocation2 [shape = 'u8[8192]{0}', space=vmem, size = 0x2000, scoped, tag = 'input window, operand 0, single buffered']
    #allocation3 [shape = 's32[1]{0}', space=sflag, size = 0x4, scoped, tag = 'scoped memory for tpu_custom_call.1']
    #allocation4 [shape = 's32[1]{0}', space=sflag, size = 0x4, scoped, tag = 'scoped memory for tpu_custom_call.1']
    #allocation5 [shape = 'u8[8192]{0}', space=vmem, size = 0x2000, scoped, tag = 'output window, operand 0, single buffered']
    %7 = vsyncpa [#allocation3], 0
    %8 = vsyncpa [#allocation4], 0
    // Predicated region
    $region2: #{tpu_custom_call.1} parent=1 // pred_check
      _
    $region3: #{tpu_custom_call.1} parent=1 // pred_check_branch
      %10 = sbr.rel (0) target = $region5
    $region4: #{tpu_custom_call.1} parent=1 // pred_region
      %s12 = ssub.s32 256, 256
      %13 = vsyncadd [#allocation3], %s12
      %s14 = sshll.u32 [#allocation2], 4
      %s15 = int_to_ptr.vmem [resolvable:$true] %s14
      %20 = dma.hbm_to_vmem [thread:$0]  %s0, 256, %s15, [#allocation3], 128, 128, 8
    $region5: #{tpu_custom_call.1} parent=1 // pred_fallthru
      _
    // Predicated region
    $region6: #{tpu_custom_call.1} parent=1 // pred_check
      _
    $region7: #{tpu_custom_call.1} parent=1 // pred_check_branch
      %22 = sbr.rel (0) target = $region9
    $region8: #{tpu_custom_call.1} parent=1 // pred_region
      _
    $region9: #{tpu_custom_call.1} parent=1 // pred_fallthru
      _
    // Predicated region
    $region10: #{tpu_custom_call.1} parent=1 // pred_check
      _
    $region11: #{tpu_custom_call.1} parent=1 // pred_check_branch
      %24 = sbr.rel (0) target = $region13
    $region12: #{tpu_custom_call.1} parent=1 // pred_region
      %25 = dma.done [#allocation3], 256
    $region13: #{tpu_custom_call.1} parent=1 // pred_fallthru
      _
    loop: start=0, step=1, limit=2
    $region14: #{tpu_custom_call.1} parent=1 // loop_pre_header
      _
    $region15: #{tpu_custom_call.1} parent=1 // loop_header
      %s27 = sphi 0, %s31
      %p28 = scmp.ge.s32.totalorder %s27, 2
      %v32 = vphi 0.0, %v46
    $region16: #{tpu_custom_call.1} parent=1 // loop_header_branch
      %30 = sbr.rel (%p28) target = $region20
    $region17: #{tpu_custom_call.1} parent=1 // loop_body
      %s33 = smul.u32 %s27, 2
      %s34 = smul.addr %s33, 4
      %s35 = scalar_lea.vmem [#allocation2], %s34
      %v36 = vld [vmem:[%s35] sm:$0xff]
      %v38 = vcombine.high %v36, %v36
      %vm40 = vcmask 1043456
      %v41 = vsel %vm40, %v36, 0.0
      %v42 = vsel %vm40, %v38, 0.0
      %v43 = vadd.f32 %v41, %v42
      %44 = vadd.xlane.f32.xlu0 %v43
      %v45 = vpop.xlane.xlu0 %44
      %v46 = vadd.f32 %v32, %v45
    $region18: #{tpu_custom_call.1} parent=1 // loop_footer
      %s31 = sadd.s32 1, %s27
    $region19: #{tpu_custom_call.1} parent=1 // loop_footer_branch
      %26 = sbr.rel target = $region15
    $region20: #{tpu_custom_call.1} parent=1 // loop_exit
      _
    %v47 = vmul.f32 %v32, 0.001953125
    loop: start=0, step=1, limit=2
    $region21: #{tpu_custom_call.1} parent=1 // loop_pre_header
      _
    $region22: #{tpu_custom_call.1} parent=1 // loop_header
      %s49 = sphi 0, %s53
      %p50 = scmp.ge.s32.totalorder %s49, 2
      %v54 = vphi 0.0, %v79
    $region23: #{tpu_custom_call.1} parent=1 // loop_header_branch
      %52 = sbr.rel (%p50) target = $region27
    $region24: #{tpu_custom_call.1} parent=1 // loop_body
      %s55 = smul.u32 %s49, 2
      %s56 = smul.addr %s55, 4
      %s57 = scalar_lea.vmem [#allocation2], %s56
      %v58 = vld [vmem:[%s57] sm:$0xff]
      %v61 = vunpack.c.l.s4 839922192
      %v62 = vunpack.c.0.s8 %v61
      %v63 = vlaneseq
      %v64 = vshrl.u32 %v63, 7
      %v65 = vsub.s32 %v62, %v64
      %v66 = vrot.slane %v47, %v65
      %v68 = vsub.f32 %v58, %v66
      %v69 = vmul.f32 %v68, %v68
      %v71 = vcombine.high %v69, %v69
      %vm73 = vcmask 1043456
      %v74 = vsel %vm73, %v69, 0.0
      %v75 = vsel %vm73, %v71, 0.0
      %v76 = vadd.f32 %v74, %v75
      %77 = vadd.xlane.f32.xlu0 %v76
      %v78 = vpop.xlane.xlu0 %77
      %v79 = vadd.f32 %v54, %v78
    $region25: #{tpu_custom_call.1} parent=1 // loop_footer
      %s53 = sadd.s32 1, %s49
    $region26: #{tpu_custom_call.1} parent=1 // loop_footer_branch
      %48 = sbr.rel target = $region22
    $region27: #{tpu_custom_call.1} parent=1 // loop_exit
      _
    %v80 = vmul.f32 %v54, 0.001953125
    %v81 = vmax.f32 %v80, 0.0
    %v82 = vadd.f32 %v81, 1e-05
    %v83 = vrsqrt.pop %v82
    loop: start=0, step=1, limit=2
    $region28: #{tpu_custom_call.1} parent=1 // loop_pre_header
      _
    $region29: #{tpu_custom_call.1} parent=1 // loop_header
      %s85 = sphi 0, %s89
      %p86 = scmp.ge.s32.totalorder %s85, 2
    $region30: #{tpu_custom_call.1} parent=1 // loop_header_branch
      %88 = sbr.rel (%p86) target = $region34
    $region31: #{tpu_custom_call.1} parent=1 // loop_body
      %s90 = smul.u32 %s85, 4
      %s91 = scalar_lea.vmem %s1, %s90
      %v92 = vld [vmem:[%s91] sm:$0xf]
      %v93 = vmul.f32 %v92, %v83
      %v94 = vmul.f32 %v93, %v47
      %96 = vrot.lane.b32.xlu0 %v94, 1
      %v97 = vpop.permute.xlu0 %96
      %v99 = vsub.f32 %v92, %v97
      %s100 = smul.u32 %s85, 2
      %s101 = smul.addr %s100, 4
      %s102 = scalar_lea.vmem [#allocation2], %s101
      %v103 = vld [vmem:[%s102] sm:$0xff]
      %105 = vset.pattern.permute.xlu0 0
      %106 = vperm.xlu0 %105, %v93
      %v107 = vpop.permute.xlu0 %106
      %v109 = vunpack.c.l.s4 839922192
      %v110 = vunpack.c.0.s8 %v109
      %v111 = vlaneseq
      %v112 = vshrl.u32 %v111, 7
      %v113 = vsub.s32 %v110, %v112
      %v114 = vrot.slane %v107, %v113
      %v116 = vmul.f32 %v103, %v114
      %118 = vset.pattern.permute.xlu0 1
      %119 = vperm.xlu0 %118, %v99
      %v120 = vpop.permute.xlu0 %119
      %v122 = vunpack.c.l.s4 839922192
      %v123 = vunpack.c.0.s8 %v122
      %v124 = vlaneseq
      %v125 = vshrl.u32 %v124, 7
      %v126 = vsub.s32 %v123, %v125
      %v127 = vrot.slane %v120, %v126
      %v129 = vadd.f32 %v116, %v127
      %s130 = smul.addr %s100, 4
      %s131 = scalar_lea.vmem [#allocation5], %s130
      %132 = vst [vmem:[%s131] sm:$0xff] %v129
    $region32: #{tpu_custom_call.1} parent=1 // loop_footer
      %s89 = sadd.s32 1, %s85
    $region33: #{tpu_custom_call.1} parent=1 // loop_footer_branch
      %84 = sbr.rel target = $region29
    $region34: #{tpu_custom_call.1} parent=1 // loop_exit
      _
    // Predicated region
    $region35: #{tpu_custom_call.1} parent=1 // pred_check
      _
    $region36: #{tpu_custom_call.1} parent=1 // pred_check_branch
      %134 = sbr.rel (0) target = $region38
    $region37: #{tpu_custom_call.1} parent=1 // pred_region
      %s136 = ssub.s32 256, 256
      %137 = vsyncadd [#allocation4], %s136
      %s138 = sshll.u32 [#allocation5], 4
      %s139 = int_to_ptr.vmem [resolvable:$true] %s138
      %144 = dma.vmem_to_hbm [thread:$0]  %s139, 256, %s2, [#allocation4], 128, 128, 8
    $region38: #{tpu_custom_call.1} parent=1 // pred_fallthru
      _
    // Predicated region
    $region39: #{tpu_custom_call.1} parent=1 // pred_check
      _
    $region40: #{tpu_custom_call.1} parent=1 // pred_check_branch
      %146 = sbr.rel (0) target = $region42
    $region41: #{tpu_custom_call.1} parent=1 // pred_region
      %147 = dma.done [#allocation4], 256
    $region42: #{tpu_custom_call.1} parent=1 // pred_fallthru
      _
    %148 = vsyncpa [#allocation3], 1
    %149 = vsyncpa [#allocation4], 1

</llo_original>
